<compile_context>
chip_gen: v5e
topology: v5e:2x2
jax: 0.10.0
libtpu: 0.0.40
codegen_flags: <defaults>
</compile_context>

<pallas_src>
from functools import partial

import jax
import jax.numpy as jnp
from jax.experimental import pallas as pl
from jax.experimental.pallas import tpu as pltpu


# --------------------------------------------------------------------------- #
# Kernels
# --------------------------------------------------------------------------- #
def _copy_kernel(x_ref, o_ref):
    # Identity copy: the channel shuffle is done entirely by the index_maps.
    o_ref[...] = x_ref[...]


def _interleave_kernel(x_ref, o_ref, *, num_slices, hw):
    # x_ref: (S, Ct, HW)   slice-major input channels for one channel tile.
    # o_ref: (Ct, S*HW)    contiguous output block for the same tile.
    # S is small (typically 2-3): static unroll of lane-offset stores.
    for s in range(num_slices):
        o_ref[:, s * hw:(s + 1) * hw] = x_ref[s]


# --------------------------------------------------------------------------- #
# Tiling helpers
# --------------------------------------------------------------------------- #
def _round_up(n, m):
    return -(-n // m) * m


def _sublane_multiple(dtype):
    # Packed dtypes pack along sublanes: 8 for f32, 16 for bf16, 32 for int8/fp8.
    return max(8, 32 // jnp.dtype(dtype).itemsize)


def _device_kind():
    try:
        return jax.devices()[0].device_kind.lower()
    except Exception:
        return ""


def _target_block_bytes():
    """Combined (input + output) per-block VMEM budget, per TPU generation."""
    kind = _device_kind()
    if "v6" in kind or "v7" in kind:
        # 4 MiB in + 4 MiB out; double-buffered -> 16 MiB, under the 32 MiB scoped VMEM.
        return 8 << 20
    # v5e & older/unknown: 16 MiB default scoped VMEM -> keep ~2 MiB per buffer.
    return 4 << 20


def _choose_channel_tile(C, bytes_per_channel, sub, target_bytes):
    """Channel tile: a multiple of `sub` (or == C) whose block fits the budget."""
    if C <= sub:
        return C                      # full-dim block is always legal
    max_ct = (C // sub) * sub         # never exceed C (last grid block may be ragged)
    budget_ct = max(sub, (target_bytes // max(bytes_per_channel, 1)) // sub * sub)
    ct = min(max_ct, budget_ct)
    # Prefer an evenly dividing tile at/below the budget (no ragged tail).
    for cand in range(ct, sub - 1, -sub):
        if C % cand == 0:
            return cand
    return ct


# --------------------------------------------------------------------------- #
# Wrapper
# --------------------------------------------------------------------------- #
def channel_mixer(x: jax.Array, num_slices: int = 2) -> jax.Array:
    """Pallas implementation of ChannelMixer.forward.

    Args:
      x: (B, S*C, H, W) array, NCHW layout.
      num_slices: S, number of channel slices.
    Returns:
      (B, S*C, H, W) array with out[:, c*S + s] = x[:, s*C + c].
    """
    B, SC, H, W = x.shape
    S = num_slices
    assert SC % S == 0, "channel dim must be divisible by num_slices"
    C = SC // S
    HW = H * W
    itemsize = jnp.dtype(x.dtype).itemsize
    sub = _sublane_multiple(x.dtype)
    target = _target_block_bytes()

    # NOTE: assumes x arrives in contiguous NCHW layout so this reshape is free.
    x_view = x.reshape(B, S, C, HW)
    cost = pl.CostEstimate(flops=0, transcendentals=0,
                           bytes_accessed=2 * x.size * itemsize)

    lane_aligned = (HW % 128 == 0)
    long_rows = (HW * itemsize >= 2048)   # strided output bursts still HBM-efficient

    if lane_aligned and long_rows:
        # --- DMA-shuffle path: permutation purely in the index_maps. ----------
        per_chan = 2 * HW * itemsize                 # in + out bytes per channel
        ct = _choose_channel_tile(C, per_chan, sub, target)
        block_bytes = ct * per_chan
        grid = (B, S, pl.cdiv(C, ct))
        in_specs = [pl.BlockSpec((None, None, ct, HW),
                                 lambda b, s, cb: (b, s, cb, 0))]
        out_specs = pl.BlockSpec((None, ct, HW),
                                 lambda b, s, cb: (b, cb, s))
        kernel = _copy_kernel
    else:
        # --- Interleave path: contiguous output block, S-way interleave in-kernel.
        # Size from the padded (8,128) footprint, not nominal bytes.
        per_chan = (S * _round_up(HW, 128) + _round_up(S * HW, 128)) * itemsize
        ct = _choose_channel_tile(C, per_chan, sub, target)
        block_bytes = ct * per_chan
        grid = (B, pl.cdiv(C, ct))
        in_specs = [pl.BlockSpec((None, S, ct, HW),
                                 lambda b, cb: (b, 0, cb, 0))]
        out_specs = pl.BlockSpec((None, ct, S * HW),
                                 lambda b, cb: (b, cb, 0))
        kernel = partial(_interleave_kernel, num_slices=S, hw=HW)

    # Double-buffered (in + out) + headroom; capped for v7x's 64 MiB physical VMEM.
    vmem_limit = int(min(64 << 20, max(16 << 20, 2 * block_bytes + (4 << 20))))

    def run(dim_sems):
        return pl.pallas_call(
            kernel,
            out_shape=jax.ShapeDtypeStruct((B, C, S * HW), x.dtype),
            grid_spec=pltpu.PrefetchScalarGridSpec(
                num_scalar_prefetch=0,
                grid=grid,
                in_specs=in_specs,
                out_specs=out_specs,
            ),
            compiler_params=pltpu.CompilerParams(
                dimension_semantics=dim_sems,
                vmem_limit_bytes=vmem_limit),
            cost_estimate=cost,
        )(x_view)

    plain = ("parallel",) * len(grid)
    if "v7" in _device_kind():
        # Shard the batch axis across v7x's two TensorCores; fall back if it
        # fails to lower on this toolchain.
        try:
            out = run((pltpu.CORE_PARALLEL,) + (pltpu.PARALLEL,) * (len(grid) - 1))
        except Exception:
            out = run(plain)
    else:
        out = run(plain)

    return out.reshape(B, C * S, H, W)


# --------------------------------------------------------------------------- #
# Reference & tests
# --------------------------------------------------------------------------- #
def _reference(x: jax.Array, num_slices: int) -> jax.Array:
    # Pure-JAX reference reproducing the PyTorch einops/permute semantics.
    B, SC, H, W = x.shape
    S = num_slices
    C = SC // S
    y = x.reshape(B, S, C, H, W)            # b (s c) h w -> b s c h w
    y = jnp.transpose(y, (0, 2, 1, 3, 4))   # b s c h w -> b c s h w
    return y.reshape(B, C * S, H, W)        # b c s h w -> b (c s) h w


if __name__ == "__main__":
    k1, k2, k3, k4 = jax.random.split(jax.random.PRNGKey(0), 4)

    # Test 1: interleave path, lane-aligned but short rows (HW=256 f32 = 1 KiB), S=2.
    x1 = jax.random.normal(k1, (2, 4, 16, 16), dtype=jnp.float32)
    out1 = jax.block_until_ready(channel_mixer(x1, num_slices=2))
    ref1 = _reference(x1, 2)
    assert out1.shape == ref1.shape
    assert jnp.array_equal(out1, ref1), "interleave path (aligned) mismatch"

    # Test 2: interleave path, unaligned rows (HW=144), S=3.
    x2 = jax.random.normal(k2, (2, 6, 12, 12), dtype=jnp.float32)
    out2 = jax.block_until_ready(channel_mixer(x2, num_slices=3))
    ref2 = _reference(x2, 3)
    assert out2.shape == ref2.shape
    assert jnp.array_equal(out2, ref2), "interleave path (unaligned) mismatch"

    # Test 3: DMA-shuffle path (HW=1024 f32 = 4 KiB rows, lane-aligned), S=2.
    x3 = jax.random.normal(k3, (2, 32, 32, 32), dtype=jnp.float32)
    out3 = jax.block_until_ready(channel_mixer(x3, num_slices=2))
    ref3 = _reference(x3, 2)
    assert out3.shape == ref3.shape
    assert jnp.array_equal(out3, ref3), "dma-shuffle path mismatch"

    # Test 4: bf16 (sublane multiple 16) + ragged last channel block (C=24, ct=16).
    x4 = jax.random.normal(k4, (1, 48, 16, 24), dtype=jnp.bfloat16)
    out4 = jax.block_until_ready(channel_mixer(x4, num_slices=2))
    ref4 = _reference(x4, 2)
    assert out4.shape == ref4.shape
    assert jnp.array_equal(out4, ref4), "bf16 / ragged-tile path mismatch"

    print("KERNEL_OK")
</pallas_src>

<mosaic_0001>
module attributes {stable_mosaic.version = 11 : i64} {
  func.func @_interleave_kernel(%arg0: i32, %arg1: i32, %arg2: memref<1x2x2x256xf32, #tpu.memory_space<vmem>>, %arg3: memref<1x2x512xf32, #tpu.memory_space<vmem>>) attributes {dimension_semantics = [#tpu.dimension_semantics<parallel>, #tpu.dimension_semantics<parallel>], iteration_bounds = array<i64: 2, 1>, scalar_prefetch = 0 : i64, scratch_operands = 0 : i64, tpu.core_type = #tpu.core_type<tc>, window_params = [{transform_indices = @transform_0, window_bounds = array<i64: 1, 2, 2, 256>}, {transform_indices = @transform_1, window_bounds = array<i64: 1, 2, 512>}]} {
    %c0 = arith.constant 0 : index
    %c0_0 = arith.constant 0 : index
    %c0_1 = arith.constant 0 : index
    %c0_2 = arith.constant 0 : index
    %0 = vector.load %arg2[%c0, %c0_0, %c0_1, %c0_2] : memref<1x2x2x256xf32, #tpu.memory_space<vmem>>, vector<1x1x2x256xf32>
    %1 = vector.shape_cast %0 : vector<1x1x2x256xf32> to vector<2x256xf32>
    %c0_3 = arith.constant 0 : index
    %c0_4 = arith.constant 0 : index
    %c0_5 = arith.constant 0 : index
    %2 = vector.load %arg3[%c0_3, %c0_4, %c0_5] : memref<1x2x512xf32, #tpu.memory_space<vmem>>, vector<1x2x256xf32>
    %3 = vector.shape_cast %2 : vector<1x2x256xf32> to vector<2x256xf32>
    %4 = vector.shape_cast %1 : vector<2x256xf32> to vector<1x2x256xf32>
    tpu.vector_store %arg3[%c0_3, %c0_4, %c0_5], %4 {strides = array<i32>} : memref<1x2x512xf32, #tpu.memory_space<vmem>>, vector<1x2x256xf32>,
    %c0_6 = arith.constant 0 : index
    %c1 = arith.constant 1 : index
    %c0_7 = arith.constant 0 : index
    %c0_8 = arith.constant 0 : index
    %5 = vector.load %arg2[%c0_6, %c1, %c0_7, %c0_8] : memref<1x2x2x256xf32, #tpu.memory_space<vmem>>, vector<1x1x2x256xf32>
    %6 = vector.shape_cast %5 : vector<1x1x2x256xf32> to vector<2x256xf32>
    %c0_9 = arith.constant 0 : index
    %c0_10 = arith.constant 0 : index
    %c256 = arith.constant 256 : index
    %7 = vector.load %arg3[%c0_9, %c0_10, %c256] : memref<1x2x512xf32, #tpu.memory_space<vmem>>, vector<1x2x256xf32>
    %8 = vector.shape_cast %7 : vector<1x2x256xf32> to vector<2x256xf32>
    %9 = vector.shape_cast %6 : vector<2x256xf32> to vector<1x2x256xf32>
    tpu.vector_store %arg3[%c0_9, %c0_10, %c256], %9 {strides = array<i32>} : memref<1x2x512xf32, #tpu.memory_space<vmem>>, vector<1x2x256xf32>,
    return
  }
  func.func @transform_0(%arg0: i32, %arg1: i32) -> (i32, i32, i32, i32) {
    %c0_i32 = arith.constant 0 : i32
    %c0_i32_0 = arith.constant 0 : i32
    %c0_i32_1 = arith.constant 0 : i32
    return %arg0, %c0_i32, %arg1, %c0_i32_0 : i32, i32, i32, i32
  }
  func.func @transform_1(%arg0: i32, %arg1: i32) -> (i32, i32, i32) {
    %c0_i32 = arith.constant 0 : i32
    %c0_i32_0 = arith.constant 0 : i32
    return %arg0, %arg1, %c0_i32 : i32, i32, i32
  }
}

</mosaic_0001>

<llo_original>
// kernel: tpu_custom_call.1
$region0: #{tpu_custom_call.1}
  #allocation0 [shape = 'u32[]', space=smem, size = 0x4, offset = 0x4, fixed_abs, tag = 'smem constant byte address 0x4 - core index']
  #allocation1 [shape = 'u32[72,128]{1,0:T(1,128)}', space=vmem, size = 0x9000, scoped, tag = 'internal scratch']
  %s0 = inlined_call_operand.hbm [shape: f32[2,2,2,256], index: 0, kind: input, shape index: {}]
  %s1 = inlined_call_operand.hbm [shape: f32[2,2,512], index: 1, kind: output, shape index: {}]
  %s2 = sld [smem:[#allocation0]]
  $region41: #{tpu_custom_call.1} parent=0
    _
  %s4 = ssub.s32 1, %s2
  %s5 = scalar_select 0, %s4, %s2
  $region1: #{tpu_custom_call.1} parent=0
    #allocation2 [shape = 'u8[8192]{0}', space=vmem, size = 0x2000, scoped, tag = 'input window, operand 0']
    #allocation3 [shape = 's32[2]{0}', space=sflag, size = 0x8, scoped, tag = 'scoped memory for tpu_custom_call.1']
    #allocation4 [shape = 's32[2]{0}', space=sflag, size = 0x8, scoped, tag = 'scoped memory for tpu_custom_call.1']
    #allocation5 [shape = 'u8[8192]{0}', space=vmem, size = 0x2000, scoped, tag = 'output window, operand 0']
    %6 = vsyncpa [#allocation3], 0
    %s7 = scalar_lea.sflag [#allocation3], 1
    %8 = vsyncpa %s7, 0
    %9 = vsyncpa [#allocation4], 0
    %s10 = scalar_lea.sflag [#allocation4], 1
    %11 = vsyncpa %s10, 0
    loop: start=0, step=1, limit=4
    $region2: #{tpu_custom_call.1} parent=1 // loop_pre_header
      _
    $region3: #{tpu_custom_call.1} parent=1 // loop_header
      %s13 = sphi 0, %s17
      %p14 = scmp.ge.s32.totalorder %s13, 4
      %s20 = sphi 0, %s32
      %s21 = sphi 0, %s28
      %s22 = sphi 0, %s20
      %s23 = sphi 0, %s21
      %s24 = sphi 0, %s22
      %s25 = sphi 0, %s23
      %s37 = sphi 0, %s39
      %s40 = sphi 0, %s37
      %s41 = sphi 0, %s40
      %s57 = sphi 0, %s41
      %s65 = sphi 0, %s67
      %s68 = sphi 0, %s65
      %s69 = sphi 0, %s68
      %s85 = sphi 0, %s69
    $region4: #{tpu_custom_call.1} parent=1 // loop_header_branch
      %16 = sbr.rel (%p14) target = $region8
    $region5: #{tpu_custom_call.1} parent=1 // loop_body
      %s18 = ssub.s32 %s13, 1
      %s19 = ssub.s32 %s13, 2
      %s26 = sadd.s32 1, %s21
      %p27 = scmp.ge.s32.totalorder %s26, 1
      %s28 = scalar_select %p27, 0, %s26
      %s29 = sadd.s32 1, %s20
      %s30 = scalar_select %p27, %s29, %s20
      %p31 = scmp.ge.s32.totalorder %s30, 2
      %s32 = scalar_select %p31, 0, %s30
      %s33 = ssub.s32 %s20, %s32
      %s34 = ssub.s32 %s21, %s28
      %s35 = sor.u32 %s33, %s34
      %p36 = scmp.eq.s32.totalorder %s35, 0
      %s38 = sadd.s32 %s37, 1
      %s39 = scalar_select %p36, %s37, %s38
      %p42 = pneg %p36
      %p43 = scmp.eq.s32.totalorder %s13, 1
      %p44 = por %p42, %p43
      %p45 = scmp.ne.s32.totalorder %s37, %s40
      %p46 = scmp.eq.s32.totalorder %s13, 0
      %p47 = por %p45, %p46
      %p48 = scmp.ne.s32.totalorder %s37, %s40
      %p49 = scmp.eq.s32.totalorder %s18, 1
      %p50 = por %p48, %p49
      %p51 = scmp.ne.s32.totalorder %s40, %s41
      %p52 = scmp.eq.s32.totalorder %s18, 0
      %p53 = por %p51, %p52
      %p54 = scmp.ne.s32.totalorder %s40, %s41
      %p55 = scmp.eq.s32.totalorder %s19, 1
      %p56 = por %p54, %p55
      %p58 = scmp.ne.s32.totalorder %s41, %s57
      %p59 = scmp.eq.s32.totalorder %s19, 0
      %p60 = por %p58, %p59
      %s61 = ssub.s32 %s20, %s32
      %s62 = ssub.s32 %s21, %s28
      %s63 = sor.u32 %s61, %s62
      %p64 = scmp.eq.s32.totalorder %s63, 0
      %s66 = sadd.s32 %s65, 1
      %s67 = scalar_select %p64, %s65, %s66
      %p70 = pneg %p64
      %p71 = scmp.eq.s32.totalorder %s13, 1
      %p72 = por %p70, %p71
      %p73 = scmp.ne.s32.totalorder %s65, %s68
      %p74 = scmp.eq.s32.totalorder %s13, 0
      %p75 = por %p73, %p74
      %p76 = scmp.ne.s32.totalorder %s65, %s68
      %p77 = scmp.eq.s32.totalorder %s18, 1
      %p78 = por %p76, %p77
      %p79 = scmp.ne.s32.totalorder %s68, %s69
      %p80 = scmp.eq.s32.totalorder %s18, 0
      %p81 = por %p79, %p80
      %p82 = scmp.ne.s32.totalorder %s68, %s69
      %p83 = scmp.eq.s32.totalorder %s19, 1
      %p84 = por %p82, %p83
      %p86 = scmp.ne.s32.totalorder %s69, %s85
      %p87 = scmp.eq.s32.totalorder %s19, 0
      %p88 = por %p86, %p87
      %p89 = scmp.le.s32.totalorder 1, %s13
      %p90 = scmp.lt.s32.totalorder %s13, 3
      %p91 = pnand %p89, %p90
      %p92 = pneg %p91
      // Predicated region
      $region9: #{tpu_custom_call.1} parent=5 // pred_check
        _
      $region10: #{tpu_custom_call.1} parent=5 // pred_check_branch
        %94 = sbr.rel (%p91) target = $region12
      $region11: #{tpu_custom_call.1} parent=5 // pred_region
        %s95 = ssub.s32 %s13, 1
      $region12: #{tpu_custom_call.1} parent=5 // pred_fallthru
        _
      %p96 = scmp.lt.s32.totalorder %s13, 2
      // Predicated region
      $region13: #{tpu_custom_call.1} parent=5 // pred_check
        %p97 = pneg %p96
      $region14: #{tpu_custom_call.1} parent=5 // pred_check_branch
        %99 = sbr.rel (%p97) target = $region16
      $region15: #{tpu_custom_call.1} parent=5 // pred_region
        // Predicated region
        $region17: #{tpu_custom_call.1} parent=15 // pred_check
          %p100 = pneg %p47
        $region18: #{tpu_custom_call.1} parent=15 // pred_check_branch
          %102 = sbr.rel (%p100) target = $region20
        $region19: #{tpu_custom_call.1} parent=15 // pred_region
          %s103 = sand.u32 %s37, 1
          %s104 = scalar_lea.sflag [#allocation3], %s103
          %s105 = sand.u32 %s37, 1
          %s106 = smul.addr %s105, 8
          %s107 = scalar_lea.vmem [#allocation2], %s106
          %109 = vsyncadd %s104, 0
          %s110 = smul.addr %s21, 2
          %s111 = smul.addr %s20, 4
          %s112 = sadd.s32 %s110, %s111
          %s113 = smul.addr %s112, 2
          %s114 = scalar_lea.hbm %s0, %s113
          %s115 = sshll.u32 %s114, 4
          %s116 = int_to_ptr.hbm [resolvable:$true] %s115
          %s117 = sshll.u32 %s107, 4
          %s118 = int_to_ptr.vmem [resolvable:$true] %s117
          %123 = dma.hbm_to_vmem [thread:$0]  %s116, 128, %s118, %s104, 64, 64, 4
        $region20: #{tpu_custom_call.1} parent=15 // pred_fallthru
          _
      $region16: #{tpu_custom_call.1} parent=5 // pred_fallthru
        _
      %p124 = scmp.le.s32.totalorder 1, %s13
      %p125 = scmp.lt.s32.totalorder %s13, 3
      %p126 = pnand %p124, %p125
      %p127 = pneg %p126
      // Predicated region
      $region21: #{tpu_custom_call.1} parent=5 // pred_check
        _
      $region22: #{tpu_custom_call.1} parent=5 // pred_check_branch
        %129 = sbr.rel (%p126) target = $region24
      $region23: #{tpu_custom_call.1} parent=5 // pred_region
        %s130 = ssub.s32 %s13, 1
        %s131 = sand.u32 %s40, 1
        %s132 = scalar_lea.sflag [#allocation3], %s131
        %s133 = sand.u32 %s40, 1
        %s134 = smul.addr %s133, 8
        %s135 = scalar_lea.vmem [#allocation2], %s134
        // Predicated region
        $region25: #{tpu_custom_call.1} parent=23 // pred_check
          %p136 = pneg %p53
        $region26: #{tpu_custom_call.1} parent=23 // pred_check_branch
          %138 = sbr.rel (%p136) target = $region28
        $region27: #{tpu_custom_call.1} parent=23 // pred_region
          %140 = dma.done %s132, 128
        $region28: #{tpu_custom_call.1} parent=23 // pred_fallthru
          _
        %s141 = sand.u32 %s40, 1
        %s142 = scalar_lea.sflag [#allocation3], %s141
        %s143 = sand.u32 %s40, 1
        %s144 = smul.addr %s143, 8
        %s145 = scalar_lea.vmem [#allocation2], %s144
        %p146 = pneg %p53
        %p147 = pneg %p50
        %p148 = pneg %p81
        %p149 = pneg %p78
        %s150 = sand.u32 %s68, 1
        %s151 = scalar_lea.sflag [#allocation4], %s150
        %s152 = sand.u32 %s68, 1
        %s153 = smul.addr %s152, 8
        %s154 = scalar_lea.vmem [#allocation5], %s153
        %v155 = vld [vmem:[%s135] sm:$0xf]
        %156 = vst [vmem:[%s154] sm:$0xf] %v155
        %s157 = scalar_lea.vmem %s135, 4 [#allocation2]
        %v158 = vld [vmem:[%s157] sm:$0xf]
        %159 = vst [vmem:[%s154 + $0x4] sm:$0xf] %v158
        %s160 = sand.u32 %s68, 1
        %s161 = scalar_lea.sflag [#allocation4], %s160
        %s162 = sand.u32 %s68, 1
        %s163 = smul.addr %s162, 8
        %s164 = scalar_lea.vmem [#allocation5], %s163
        // Predicated region
        $region29: #{tpu_custom_call.1} parent=23 // pred_check
          %p165 = pneg %p78
        $region30: #{tpu_custom_call.1} parent=23 // pred_check_branch
          %167 = sbr.rel (%p165) target = $region32
        $region31: #{tpu_custom_call.1} parent=23 // pred_region
          %169 = vsyncadd %s161, 0
          %s170 = smul.addr %s23, 4
          %s171 = smul.addr %s22, 4
          %s172 = sadd.s32 %s170, %s171
          %s173 = smul.addr %s172, 2
          %s174 = scalar_lea.hbm %s1, %s173
          %s176 = sshll.u32 %s164, 4
          %s177 = int_to_ptr.vmem [resolvable:$true] %s176
          %s178 = sshll.u32 %s174, 4
          %s179 = int_to_ptr.hbm [resolvable:$true] %s178
          %181 = dma.vmem_to_hbm [thread:$0]  %s177, 128, %s179, %s161
        $region32: #{tpu_custom_call.1} parent=23 // pred_fallthru
          _
      $region24: #{tpu_custom_call.1} parent=5 // pred_fallthru
        _
      %p182 = scmp.le.s32.totalorder 2, %s13
      // Predicated region
      $region33: #{tpu_custom_call.1} parent=5 // pred_check
        %p183 = pneg %p182
      $region34: #{tpu_custom_call.1} parent=5 // pred_check_branch
        %185 = sbr.rel (%p183) target = $region36
      $region35: #{tpu_custom_call.1} parent=5 // pred_region
        %s186 = ssub.s32 %s13, 2
        // Predicated region
        $region37: #{tpu_custom_call.1} parent=35 // pred_check
          %p187 = pneg %p84
        $region38: #{tpu_custom_call.1} parent=35 // pred_check_branch
          %189 = sbr.rel (%p187) target = $region40
        $region39: #{tpu_custom_call.1} parent=35 // pred_region
          %s190 = sand.u32 %s69, 1
          %s191 = scalar_lea.sflag [#allocation4], %s190
          %s192 = sand.u32 %s69, 1
          %s193 = smul.addr %s192, 8
          %s194 = scalar_lea.vmem [#allocation5], %s193
          %196 = dma.done %s191, 128
        $region40: #{tpu_custom_call.1} parent=35 // pred_fallthru
          _
      $region36: #{tpu_custom_call.1} parent=5 // pred_fallthru
        _
    $region6: #{tpu_custom_call.1} parent=1 // loop_footer
      %s17 = sadd.s32 1, %s13
    $region7: #{tpu_custom_call.1} parent=1 // loop_footer_branch
      %12 = sbr.rel target = $region3
    $region8: #{tpu_custom_call.1} parent=1 // loop_exit
      _
    %197 = vsyncpa [#allocation3], 1
    %s198 = scalar_lea.sflag [#allocation3], 1
    %199 = vsyncpa %s198, 1
    %200 = vsyncpa [#allocation4], 1
    %s201 = scalar_lea.sflag [#allocation4], 1
    %202 = vsyncpa %s201, 1

</llo_original>
